<compile_context>
chip_gen: v6e
topology: v6e:2x2x1
jax: 0.10.0
libtpu: 0.0.40
codegen_flags: <defaults>
</compile_context>

<pallas_src>
import math

import jax
import jax.numpy as jnp
from jax.experimental import pallas as pl
from jax.experimental.pallas import tpu as pltpu


def fused_proj_kernel(x_ref, w_ref, b_ref, o_ref):
    """One tile of packed spatial rows through the fused projection.

    x_ref : (TR, P)  attn-weighted (blurred) rows, P = pack*C lanes (lane-dense)
    w_ref : (P, P)   block-diagonal fused weight  kron(I_pack, Wv^T @ Wp^T)
    b_ref : (1, P)   proj bias tiled `pack` times
    o_ref : (TR, P)  packed output (same row-major memory as (TR*pack, D))
    """
    o_ref[...] = (
        jnp.dot(x_ref[...], w_ref[...], preferred_element_type=jnp.float32)
        + b_ref[...]
    ).astype(o_ref.dtype)


def _round_up(a, b):
    return (a + b - 1) // b * b


def onnx_outlook_attention(x, wv, wp, bp, *, kernel_size=3, padding=1,
                           tile_rows=512, stream_dtype=jnp.float32):
    """x: (B, H, W, C) float32.  wv / wp: (D, C) / (D, D) torch Linear weights
    (convention y = x @ W.T + b), bp: (D,) proj bias.  Returns (B, H, W, D).

    stream_dtype: dtype of the streamed activations / weights fed to the MXU.
    Set to jnp.bfloat16 on v6e/v7x to halve the dominant HBM read stream
    (accumulation stays f32 via preferred_element_type)."""
    B, H, W, C = x.shape
    D = wp.shape[0]
    assert wv.shape == (D, C) and wp.shape == (D, D) and C == D, \
        "OutlookAttention uses square Linear(dim, dim) layers"
    k2 = kernel_size * kernel_size
    N = B * H * W

    # --- constant attention row softmax(eye(k2))[0], baked as Python floats.
    #     (index 0 = unfold position (ky=0,kx=0), matching F.unfold ordering.)
    denom = math.exp(1.0) + (k2 - 1)
    a0 = [math.exp(1.0) / denom] + [1.0 / denom] * (k2 - 1)

    # --- fold the fixed attention into the unfold: a 3x3 scalar-weight blur
    #     over zero-padded shifted views (pure data movement, fused by XLA;
    #     x is read ~once instead of materializing a 9x patches tensor).
    xp = jnp.pad(x.astype(jnp.float32),
                 ((0, 0), (padding, padding), (padding, padding), (0, 0)))
    blurred = jnp.zeros((B, H, W, C), jnp.float32)
    j = 0
    for ky in range(kernel_size):
        for kx in range(kernel_size):
            blurred = blurred + a0[j] * xp[:, ky:ky + H, kx:kx + W, :]
            j += 1

    # --- fuse the two projections:  out = blurred @ (Wv^T @ Wp^T) + b_proj
    w_fused = wv.astype(jnp.float32).T @ wp.astype(jnp.float32).T        # (C, D)

    # --- lane-dense packing: `pack` consecutive rows share one 128-wide lane
    #     row (identical row-major memory) against a block-diagonal weight.
    pack = 128 // D if (D < 128 and 128 % D == 0) else 1
    P = pack * D
    w_block = jnp.kron(jnp.eye(pack, dtype=jnp.float32), w_fused)        # (P, P)
    b_block = jnp.tile(bp.astype(jnp.float32), pack).reshape(1, P)

    n_rows = -(-N // pack)                       # packed rows needed
    tr = _round_up(min(tile_rows, _round_up(n_rows, 8)), 8)
    rows_pad = _round_up(n_rows, tr)             # pad so any B*H*W works

    flat = blurred.reshape(N, C)
    flat = jnp.pad(flat, ((0, rows_pad * pack - N), (0, 0)))
    packed = flat.reshape(rows_pad, P).astype(stream_dtype)

    grid = (rows_pad // tr,)
    out = pl.pallas_call(
        fused_proj_kernel,
        out_shape=jax.ShapeDtypeStruct((rows_pad, P), jnp.float32),
        grid=grid,
        in_specs=[
            pl.BlockSpec((tr, P), lambda i: (i, 0)),   # packed activations
            pl.BlockSpec((P, P), lambda i: (0, 0)),    # fused block-diag weight
            pl.BlockSpec((1, P), lambda i: (0, 0)),    # packed proj bias
        ],
        out_specs=pl.BlockSpec((tr, P), lambda i: (i, 0)),
        compiler_params=pltpu.CompilerParams(
            dimension_semantics=("parallel",)),
    )(packed, w_block.astype(stream_dtype), b_block)

    out = out.reshape(rows_pad * pack, D)[:N]
    return out.reshape(B, H, W, D).astype(x.dtype)


def _reference(x, wv, wp, bp, kernel_size=3, padding=1):
    """Pure-JAX replica of the torch forward (independent correctness check)."""
    B, H, W, C = x.shape
    k2 = kernel_size * kernel_size
    xp = jnp.pad(x, ((0, 0), (padding, padding), (padding, padding), (0, 0)))
    patches = jnp.stack([xp[:, ky:ky + H, kx:kx + W, :]
                         for ky in range(kernel_size)
                         for kx in range(kernel_size)], axis=3)   # (B,H,W,k2,C)
    v = patches @ wv.T                                            # (B,H,W,k2,D)
    attn = jax.nn.softmax(jnp.eye(k2, dtype=jnp.float32), axis=-1)
    out = jnp.einsum('jk,bhwkd->bhwjd', attn, v)[:, :, :, 0, :]
    return out @ wp.T + bp


if __name__ == "__main__":
    # Small shapes consistent with the module: embed_dim=32, num_heads=8
    # (head_dim=4), kernel_size=3, stride=1, padding=1.
    B, H, W = 2, 8, 8
    embed_dim = 32

    key = jax.random.PRNGKey(0)
    kx, kv, kp, kb = jax.random.split(key, 4)
    x = jax.random.normal(kx, (B, H, W, embed_dim), dtype=jnp.float32)
    wv = jax.random.normal(kv, (embed_dim, embed_dim), dtype=jnp.float32) * 0.02
    wp = jax.random.normal(kp, (embed_dim, embed_dim), dtype=jnp.float32) * 0.02
    bp = jax.random.normal(kb, (embed_dim,), dtype=jnp.float32) * 0.02
    # Note: the module also holds `self.attn = Linear(dim, k^4 * num_heads)`,
    # but this ONNX forward never uses it, so no parameter is materialized.

    run = jax.jit(onnx_outlook_attention)
    out = jax.block_until_ready(run(x, wv, wp, bp))

    ref = _reference(x, wv, wp, bp)
    assert out.shape == (B, H, W, embed_dim)
    assert jnp.allclose(out, ref, atol=1e-4, rtol=1e-4)
    print("KERNEL_OK")
</pallas_src>

<mosaic_0001>
module attributes {stable_mosaic.version = 11 : i64} {
  func.func @fused_proj_kernel(%arg0: i32, %arg1: memref<32x128xf32, #tpu.memory_space<vmem>>, %arg2: memref<128x128xf32, #tpu.memory_space<vmem>>, %arg3: memref<1x128xf32, #tpu.memory_space<vmem>>, %arg4: memref<32x128xf32, #tpu.memory_space<vmem>>) attributes {dimension_semantics = [#tpu.dimension_semantics<parallel>], iteration_bounds = array<i64: 1>, scalar_prefetch = 0 : i64, scratch_operands = 0 : i64, tpu.core_type = #tpu.core_type<tc>, window_params = [{transform_indices = @transform_0, window_bounds = array<i64: 32, 128>}, {pipeline_mode = #tpu.pipeline_mode<synchronous>, transform_indices = @transform_1, window_bounds = array<i64: 128, 128>}, {pipeline_mode = #tpu.pipeline_mode<synchronous>, transform_indices = @transform_2, window_bounds = array<i64: 1, 128>}, {transform_indices = @transform_3, window_bounds = array<i64: 32, 128>}]} {
    %c0 = arith.constant 0 : index
    %c0_0 = arith.constant 0 : index
    %0 = vector.load %arg1[%c0, %c0_0] : memref<32x128xf32, #tpu.memory_space<vmem>>, vector<32x128xf32>
    %c0_1 = arith.constant 0 : index
    %c0_2 = arith.constant 0 : index
    %1 = vector.load %arg2[%c0_1, %c0_2] : memref<128x128xf32, #tpu.memory_space<vmem>>, vector<128x128xf32>
    %cst = arith.constant dense<0.000000e+00> : vector<32x128xf32>
    %2 = tpu.matmul %0, %1, %cst {dimension_numbers = #tpu.dot_dimension_numbers<[1], [0], [0], [1], [0, 0, 1, 1], [], []>} : vector<32x128xf32>, vector<128x128xf32>, vector<32x128xf32> -> vector<32x128xf32>
    %c0_3 = arith.constant 0 : index
    %c0_4 = arith.constant 0 : index
    %3 = vector.load %arg3[%c0_3, %c0_4] : memref<1x128xf32, #tpu.memory_space<vmem>>, vector<1x128xf32>
    %4 = vector.broadcast %3 : vector<1x128xf32> to vector<32x128xf32>
    %5 = arith.addf %2, %4 : vector<32x128xf32>
    %c0_5 = arith.constant 0 : index
    %c0_6 = arith.constant 0 : index
    %6 = vector.load %arg4[%c0_5, %c0_6] : memref<32x128xf32, #tpu.memory_space<vmem>>, vector<32x128xf32>
    tpu.vector_store %arg4[%c0_5, %c0_6], %5 {strides = array<i32>} : memref<32x128xf32, #tpu.memory_space<vmem>>, vector<32x128xf32>,
    return
  }
  func.func @transform_0(%arg0: i32) -> (i32, i32) {
    %c0_i32 = arith.constant 0 : i32
    %c0_i32_0 = arith.constant 0 : i32
    return %arg0, %c0_i32 : i32, i32
  }
  func.func @transform_1(%arg0: i32) -> (i32, i32) {
    %c0_i32 = arith.constant 0 : i32
    %c0_i32_0 = arith.constant 0 : i32
    %c0_i32_1 = arith.constant 0 : i32
    return %c0_i32, %c0_i32_0 : i32, i32
  }
  func.func @transform_2(%arg0: i32) -> (i32, i32) {
    %c0_i32 = arith.constant 0 : i32
    %c0_i32_0 = arith.constant 0 : i32
    %c0_i32_1 = arith.constant 0 : i32
    return %c0_i32, %c0_i32_0 : i32, i32
  }
  func.func @transform_3(%arg0: i32) -> (i32, i32) {
    %c0_i32 = arith.constant 0 : i32
    %c0_i32_0 = arith.constant 0 : i32
    return %arg0, %c0_i32 : i32, i32
  }
}

</mosaic_0001>

<llo_original>
// kernel: tile.8
$region0: #{tile.8}
  #allocation0 [shape = 's32[1]{0}', space=sflag, size = 0x4, scoped, tag = 'scoped memory for tile.8']
  %s0 = inlined_call_operand.vmem [shape: f32[32], index: 0, kind: input, shape index: {}]
  %s1 = inlined_call_operand.vmem [shape: f32[4,32], index: 1, kind: output, shape index: {}]
  // Predicated region
  $region2: #{tile.8} parent=0 // pred_check
    _
  $region3: #{tile.8} parent=0 // pred_check_branch
    %3 = sbr.rel (0) target = $region5
  $region4: #{tile.8} parent=0 // pred_region
    _
  $region5: #{tile.8} parent=0 // pred_fallthru
    _
  %v4 = vld [vmem:[%s0] ss:$0 sm:$0xff]
  %5 = vst [vmem:[%s1] sm:$0xf] %v4

// kernel: tile.9
$region0: #{tile.9}
  %s0 = inlined_call_operand.vmem [shape: f32[4,32], index: 0, kind: input, shape index: {}]
  %s1 = inlined_call_operand.vmem [shape: f32[1,128], index: 1, kind: output, shape index: {}]
  $region1: #{tile.9} parent=0
    #allocation0 [shape = 'u8[4096]{0}', space=vmem, size = 0x1000, scoped, tag = 'scoped mem for output reshape']
    #allocation1 [shape = 'u8[4096]{0}', space=vmem, size = 0x1000, scoped, tag = 'scoped mem for input reshape']
    %s3 = sshll.u32 1, 4
    %s4 = ssub.s32 %s3, 1
    %v5 = vld [vmem:[%s0] sm:%s4]
    %6 = vst [vmem:[#allocation1] sm:%s4] %v5
    %v7 = vld [vmem:[#allocation1] sm:$0x1]
    %vm8 = vcmask 261120
    %9 = vst.msk [vmem:[#allocation0] sm:$0x1] %vm8, %v7
    %s10 = scalar_lea.vmem [#allocation1], 3
    %v11 = vld [vmem:[%s10] sm:$0x1]
    %12 = vrot.lane.b32.xlu0 %v11, 96
    %v13 = vpop.permute.xlu0 %12
    %vm14 = vcmask 1048320
    %15 = vst.msk [vmem:[#allocation0] sm:$0x1] %vm14, %v13
    %s16 = scalar_lea.vmem [#allocation1], 2
    %v17 = vld [vmem:[%s16] sm:$0x1]
    %18 = vrot.lane.b32.xlu0 %v17, 64
    %v19 = vpop.permute.xlu0 %18
    %vm20 = vcmask 785920
    %21 = vst.msk [vmem:[#allocation0] sm:$0x1] %vm20, %v19
    %s22 = scalar_lea.vmem [#allocation1], 1
    %v23 = vld [vmem:[%s22] sm:$0x1]
    %24 = vrot.lane.b32.xlu0 %v23, 32
    %v25 = vpop.permute.xlu0 %24
    %vm26 = vcmask 523520
    %27 = vst.msk [vmem:[#allocation0] sm:$0x1] %vm26, %v25
    %s29 = sshll.u32 1, 1
    %s30 = ssub.s32 %s29, 1
    %v32 = vld [vmem:[#allocation0] sm:%s30]
    %s33 = sshll.u32 1, 1
    %s34 = ssub.s32 %s33, 1
    %35 = vst [vmem:[%s1] sm:%s34] %v32

// kernel: onnx_outlook_attention.1
$region0: #{onnx_outlook_attention.1}
  #allocation0 [shape = 'u32[]', space=smem, size = 0x4, offset = 0x4, fixed_abs, tag = 'smem constant byte address 0x4 - core index']
  #allocation1 [shape = 'u32[144,128]{1,0:T(1,128)}', space=vmem, size = 0x12000, scoped, tag = 'internal scratch']
  %s0 = inlined_call_operand.vmem [shape: f32[32,128], index: 0, kind: input, shape index: {}]
  %s1 = inlined_call_operand.vmem [shape: f32[128,128], index: 1, kind: input, shape index: {}]
  %s2 = inlined_call_operand.vmem [shape: f32[1,128], index: 2, kind: input, shape index: {}]
  %s3 = inlined_call_operand.vmem [shape: f32[32,128], index: 3, kind: output, shape index: {}]
  %s4 = sld [smem:[#allocation0]]
  $region22: #{onnx_outlook_attention.1} parent=0
    _
  %s6 = ssub.s32 1, %s4
  %s7 = scalar_select 0, %s6, %s4
  // Predicated region
  $region2: #{onnx_outlook_attention.1} parent=0 // pred_check
    _
  $region3: #{onnx_outlook_attention.1} parent=0 // pred_check_branch
    %9 = sbr.rel (0) target = $region5
  $region4: #{onnx_outlook_attention.1} parent=0 // pred_region
    _
  $region5: #{onnx_outlook_attention.1} parent=0 // pred_fallthru
    _
  // Predicated region
  $region6: #{onnx_outlook_attention.1} parent=0 // pred_check
    _
  $region7: #{onnx_outlook_attention.1} parent=0 // pred_check_branch
    %11 = sbr.rel (0) target = $region9
  $region8: #{onnx_outlook_attention.1} parent=0 // pred_region
    _
  $region9: #{onnx_outlook_attention.1} parent=0 // pred_fallthru
    _
  // Predicated region
  $region10: #{onnx_outlook_attention.1} parent=0 // pred_check
    _
  $region11: #{onnx_outlook_attention.1} parent=0 // pred_check_branch
    %13 = sbr.rel (0) target = $region13
  $region12: #{onnx_outlook_attention.1} parent=0 // pred_region
    _
  $region13: #{onnx_outlook_attention.1} parent=0 // pred_fallthru
    _
  %v14 = vld [vmem:[%s0] sm:$0xff]
  %v15 = vld [vmem:[%s0 + $0x8] sm:$0xff]
  %v16 = vld [vmem:[%s0 + $0x10] sm:$0xff]
  %v17 = vld [vmem:[%s0 + $0x18] sm:$0xff]
  %v18 = vld [vmem:[%s1] sm:$0xff]
  %v19 = vld [vmem:[%s1 + $0x8] sm:$0xff]
  %v20 = vld [vmem:[%s1 + $0x10] sm:$0xff]
  %v21 = vld [vmem:[%s1 + $0x18] sm:$0xff]
  %v22 = vld [vmem:[%s1 + $0x20] sm:$0xff]
  %v23 = vld [vmem:[%s1 + $0x28] sm:$0xff]
  %v24 = vld [vmem:[%s1 + $0x30] sm:$0xff]
  %v25 = vld [vmem:[%s1 + $0x38] sm:$0xff]
  %v26 = vld [vmem:[%s1 + $0x40] sm:$0xff]
  %v27 = vld [vmem:[%s1 + $0x48] sm:$0xff]
  %v28 = vld [vmem:[%s1 + $0x50] sm:$0xff]
  %v29 = vld [vmem:[%s1 + $0x58] sm:$0xff]
  %v30 = vld [vmem:[%s1 + $0x60] sm:$0xff]
  %v31 = vld [vmem:[%s1 + $0x68] sm:$0xff]
  %v32 = vld [vmem:[%s1 + $0x70] sm:$0xff]
  %v33 = vld [vmem:[%s1 + $0x78] sm:$0xff]
  %v34 = vld [vmem:[%s2] sm:$0x1]
  %v36 = vlaneseq
  %v37 = vshrl.u32 %v36, 7
  %v38 = vsub.s32 0, %v37
  %v39 = vrot.slane %v34, %v38
  %41 = vmatprep.subr.mxu0 0.0
  %42 = vmatpush1.msra.mxu0 %v33
  %43 = vmatprep.subr.mxu0 0.0
  %44 = vmatpush1.msra.mxu0 %v32
  %45 = vmatprep.subr.mxu0 0.0
  %46 = vmatpush1.msra.mxu0 %v31
  %47 = vmatprep.subr.mxu0 0.0
  %48 = vmatpush1.msra.mxu0 %v30
  %49 = vmatprep.subr.mxu0 0.0
  %50 = vmatpush1.msra.mxu0 %v29
  %51 = vmatprep.subr.mxu0 0.0
  %52 = vmatpush1.msra.mxu0 %v28
  %53 = vmatprep.subr.mxu0 0.0
  %54 = vmatpush1.msra.mxu0 %v27
  %55 = vmatprep.subr.mxu0 0.0
  %56 = vmatpush1.msra.mxu0 %v26
  %57 = vmatprep.subr.mxu0 0.0
  %58 = vmatpush1.msra.mxu0 %v25
  %59 = vmatprep.subr.mxu0 0.0
  %60 = vmatpush1.msra.mxu0 %v24
  %61 = vmatprep.subr.mxu0 0.0
  %62 = vmatpush1.msra.mxu0 %v23
  %63 = vmatprep.subr.mxu0 0.0
  %64 = vmatpush1.msra.mxu0 %v22
  %65 = vmatprep.subr.mxu0 0.0
  %66 = vmatpush1.msra.mxu0 %v21
  %67 = vmatprep.subr.mxu0 0.0
  %68 = vmatpush1.msra.mxu0 %v20
  %69 = vmatprep.subr.mxu0 0.0
  %70 = vmatpush1.msra.mxu0 %v19
  %71 = vmatprep.subr.mxu0 0.0
  %72 = vmatpush1.msra.mxu0 %v18
  %73 = vmatprep.subr.mxu0 0.0
  %74 = vmatpush2.msra.mxu0 0.0
  %75 = vmatprep.subr.mxu0 0.0
  %76 = vmatpush2.msra.mxu0 0.0
  %77 = vmatprep.subr.mxu0 0.0
  %78 = vmatpush2.msra.mxu0 0.0
  %79 = vmatprep.subr.mxu0 0.0
  %80 = vmatpush2.msra.mxu0 0.0
  %81 = vmatprep.subr.mxu0 0.0
  %82 = vmatpush2.msra.mxu0 0.0
  %83 = vmatprep.subr.mxu0 0.0
  %84 = vmatpush2.msra.mxu0 0.0
  %85 = vmatprep.subr.mxu0 0.0
  %86 = vmatpush2.msra.mxu0 0.0
  %87 = vmatprep.subr.mxu0 0.0
  %88 = vmatpush2.msra.mxu0 0.0
  %89 = vmatprep.subr.mxu0 0.0
  %90 = vmatpush2.msra.mxu0 0.0
  %91 = vmatprep.subr.mxu0 0.0
  %92 = vmatpush2.msra.mxu0 0.0
  %93 = vmatprep.subr.mxu0 0.0
  %94 = vmatpush2.msra.mxu0 0.0
  %95 = vmatprep.subr.mxu0 0.0
  %96 = vmatpush2.msra.mxu0 0.0
  %97 = vmatprep.subr.mxu0 0.0
  %98 = vmatpush2.msra.mxu0 0.0
  %99 = vmatprep.subr.mxu0 0.0
  %100 = vmatpush2.msra.mxu0 0.0
  %101 = vmatprep.subr.mxu0 0.0
  %102 = vmatpush2.msra.mxu0 0.0
  %103 = vmatprep.subr.mxu0 0.0
  %104 = vmatpush2.msra.mxu0 0.0
  %105 = vmatprep.mubr.f32.mxu0 0.0
  %106 = vmatmul.mubr.f32.gmra.mxu0 %v14
  %v107 = vpop.f32.mrf.mxu0
  %v108 = vadd.f32 %v39, %v107
  %v109 = vpop.f32.mrf.mxu0
  %110 = vmatprep.mubr.f32.mxu0 0.0
  %111 = vmatmul.mubr.f32.gmra.mxu0 %v15
  %v112 = vpop.f32.mrf.mxu0
  %v113 = vadd.f32 %v39, %v112
  %v114 = vpop.f32.mrf.mxu0
  %115 = vmatprep.mubr.f32.mxu0 0.0
  %116 = vmatmul.mubr.f32.gmra.mxu0 %v16
  %v117 = vpop.f32.mrf.mxu0
  %v118 = vadd.f32 %v39, %v117
  %v119 = vpop.f32.mrf.mxu0
  %120 = vmatprep.mubr.f32.mxu0 0.0
  %121 = vmatmul.mubr.f32.gmra.mxu0 %v17
  %v122 = vpop.f32.mrf.mxu0
  %v123 = vadd.f32 %v39, %v122
  %v124 = vpop.f32.mrf.mxu0
  %125 = vdwg.mxu0
  %126 = vst [vmem:[%s3] sm:$0xff] %v108
  %127 = vst [vmem:[%s3 + $0x8] sm:$0xff] %v113
  %128 = vst [vmem:[%s3 + $0x10] sm:$0xff] %v118
  %129 = vst [vmem:[%s3 + $0x18] sm:$0xff] %v123
  // Predicated region
  $region14: #{onnx_outlook_attention.1} parent=0 // pred_check
    _
  $region15: #{onnx_outlook_attention.1} parent=0 // pred_check_branch
    %131 = sbr.rel (0) target = $region17
  $region16: #{onnx_outlook_attention.1} parent=0 // pred_region
    _
  $region17: #{onnx_outlook_attention.1} parent=0 // pred_fallthru
    _
  // Predicated region
  $region18: #{onnx_outlook_attention.1} parent=0 // pred_check
    _
  $region19: #{onnx_outlook_attention.1} parent=0 // pred_check_branch
    %133 = sbr.rel (0) target = $region21
  $region20: #{onnx_outlook_attention.1} parent=0 // pred_region
    _
  $region21: #{onnx_outlook_attention.1} parent=0 // pred_fallthru
    _

</llo_original>
